<compile_context>
chip_gen: v7x
topology: tpu7x:2x2x1
jax: 0.10.0
libtpu: 0.0.40
codegen_flags: <defaults>
</compile_context>

<pallas_src>
import functools

import jax
import jax.numpy as jnp
from jax.experimental import pallas as pl
from jax.experimental.pallas import tpu as pltpu


def _mix32(h):
    """lowbias32 integer finalizer (uint32 -> well-mixed uint32)."""
    h = h ^ (h >> 16)
    h = h * jnp.uint32(0x7FEB352D)
    h = h ^ (h >> 15)
    h = h * jnp.uint32(0x846CA68B)
    h = h ^ (h >> 16)
    return h


def _seq_unit_dropout_kernel(
    seed_ref, x_ref, o_ref, *, threshold_31, replacement_id, block_rows, n_cols
):
    i = pl.program_id(0)
    x = x_ref[...]
    shape = x_ref.shape  # (block_rows, n_cols)

    # Global element counter (row-major), unique per element and independent of
    # the tiling (wraps mod 2^32 only for >4G-element inputs, which is fine for
    # a dropout mask).
    row = jax.lax.broadcasted_iota(jnp.int32, shape, 0) + i * block_rows
    col = jax.lax.broadcasted_iota(jnp.int32, shape, 1)
    ctr = (row * jnp.int32(n_cols) + col).astype(jnp.uint32)

    # Scramble the scalar seed once (scalar-unit ops, essentially free), then
    # hash counter ^ key with one lowbias32 round (VPU-only, a few ops/vreg).
    key = seed_ref[0].astype(jnp.uint32)
    key = (key ^ jnp.uint32(0x9E3779B9)) * jnp.uint32(0x85EBCA6B)
    bits = _mix32(ctr ^ key)

    # Bernoulli(p): compare the top 31 bits against a static integer threshold.
    r = (bits >> 1).astype(jnp.int32)  # non-negative 31-bit value
    drop = r < jnp.int32(threshold_31)

    # Scalar splat in the select (no jnp.full_like broadcast tile).
    o_ref[...] = jnp.where(drop, jnp.asarray(replacement_id, dtype=x.dtype), x)


def sequence_unit_dropout(x, seed, *, dropprob, replacement_id, training=True):
    """JAX/Pallas equivalent of SequenceUnitDropout.forward.

    NOTE: pass a fresh `seed` each training step for a fresh mask (caller
    responsibility, mirroring torch.rand's global RNG advancing every call).
    """
    if (not training) or dropprob == 0:
        return x
    if dropprob >= 1.0:
        return jnp.full_like(x, replacement_id)

    orig_shape = x.shape
    # Flatten to 2-D (rows, cols) keeping the last dim on the lane axis.
    x2 = x.reshape(1, -1) if x.ndim < 2 else x.reshape(-1, x.shape[-1])
    rows, cols = x2.shape

    # Row-block sized to roughly 2 MiB per block (lane-dense: full last dim),
    # multiple of 8 on the sublane axis.  With in+out double buffering this is
    # ~8 MiB resident -> fits v5e's 16 MiB and v7x's 32 MiB scoped VMEM.
    bytes_per_row = cols * x2.dtype.itemsize
    tb = max(8, (((2 * 1024 * 1024) // max(bytes_per_row, 1)) // 8) * 8)
    if tb >= rows:
        tb = rows  # full second-to-last dim is always a legal block shape
    num_blocks = pl.cdiv(rows, tb)

    # p in [0,1) mapped to a 31-bit integer threshold at trace time.
    threshold_31 = min(int(round(float(dropprob) * (1 << 31))), (1 << 31) - 1)

    kernel = functools.partial(
        _seq_unit_dropout_kernel,
        threshold_31=threshold_31,
        replacement_id=replacement_id,
        block_rows=tb,
        n_cols=cols,
    )

    seed_arr = jnp.asarray([seed], dtype=jnp.int32)

    out2 = pl.pallas_call(
        kernel,
        out_shape=jax.ShapeDtypeStruct(x2.shape, x2.dtype),
        grid_spec=pltpu.PrefetchScalarGridSpec(
            num_scalar_prefetch=1,  # seed lives in SMEM
            grid=(num_blocks,),
            in_specs=[pl.BlockSpec((tb, cols), lambda i, seed: (i, 0))],
            out_specs=pl.BlockSpec((tb, cols), lambda i, seed: (i, 0)),
        ),
        compiler_params=pltpu.CompilerParams(
            dimension_semantics=("parallel",),  # shard row-blocks across TCs (v7x)
            vmem_limit_bytes=32 * 1024 * 1024,
        ),
    )(seed_arr, x2)

    return out2.reshape(orig_shape)


if __name__ == "__main__":
    key = jax.random.PRNGKey(0)

    # "Module parameters" (constructor args), chosen deterministically.
    dropprob = 0.25
    replacement_id = -1

    # Small sequence of token ids: batch=8, seq=128, int32.
    batch, seq = 8, 128
    vocab = 1000
    x = jax.random.randint(key, (batch, seq), minval=0, maxval=vocab, dtype=jnp.int32)

    out = sequence_unit_dropout(
        x, seed=42, dropprob=dropprob, replacement_id=replacement_id, training=True
    )
    out = jax.block_until_ready(out)

    # Sanity checks: every output element is either the original token or the
    # replacement id, and the drop fraction is in a plausible range.
    is_orig = out == x
    is_repl = out == replacement_id
    assert bool(jnp.all(is_orig | is_repl))
    drop_frac = float(jnp.mean((~is_orig).astype(jnp.float32)))
    assert 0.05 < drop_frac < 0.60, f"unexpected drop fraction {drop_frac}"

    # Different seeds give different masks.
    out2 = sequence_unit_dropout(
        x, seed=7, dropprob=dropprob, replacement_id=replacement_id, training=True
    )
    out2 = jax.block_until_ready(out2)
    assert not bool(jnp.all(out == out2))

    # Eval-mode / p==0 short-circuit returns input unchanged.
    out_eval = sequence_unit_dropout(
        x, seed=42, dropprob=dropprob, replacement_id=replacement_id, training=False
    )
    assert out_eval is x

    print("KERNEL_OK")
</pallas_src>

<mosaic_0001>
module attributes {stable_mosaic.version = 11 : i64} {
  func.func @_seq_unit_dropout_kernel(%arg0: i32, %arg1: memref<1xi32, #tpu.memory_space<smem>>, %arg2: memref<8x128xi32, #tpu.memory_space<vmem>>, %arg3: memref<8x128xi32, #tpu.memory_space<vmem>>) attributes {dimension_semantics = [#tpu.dimension_semantics<parallel>], iteration_bounds = array<i64: 1>, scalar_prefetch = 1 : i64, scratch_operands = 0 : i64, tpu.core_type = #tpu.core_type<tc>, window_params = [{transform_indices = @transform_0, window_bounds = array<i64: 8, 128>}, {transform_indices = @transform_1, window_bounds = array<i64: 8, 128>}]} {
    %c0 = arith.constant 0 : index
    %c0_0 = arith.constant 0 : index
    %0 = vector.load %arg2[%c0, %c0_0] : memref<8x128xi32, #tpu.memory_space<vmem>>, vector<8x128xi32>
    %1 = tpu.iota {dimensions = array<i32: 0>} : vector<8x128xi32>
    %c8_i32 = arith.constant 8 : i32
    %2 = arith.muli %arg0, %c8_i32 : i32
    %3 = vector.broadcast %2 : i32 to vector<8x128xi32>
    %4 = arith.addi %1, %3 : vector<8x128xi32>
    %5 = tpu.iota {dimensions = array<i32: 1>} : vector<8x128xi32>
    %c128_i32 = arith.constant 128 : i32
    %6 = vector.broadcast %c128_i32 : i32 to vector<8x128xi32>
    %7 = arith.muli %4, %6 : vector<8x128xi32>
    %8 = arith.addi %7, %5 : vector<8x128xi32>
    %c0_1 = arith.constant 0 : index
    %9 = memref.load %arg1[%c0_1] : memref<1xi32, #tpu.memory_space<smem>>
    %c-1640531527_i32 = arith.constant -1640531527 : i32
    %10 = arith.xori %9, %c-1640531527_i32 : i32
    %c-2048144789_i32 = arith.constant -2048144789 : i32
    %11 = arith.muli %10, %c-2048144789_i32 : i32
    %12 = vector.broadcast %11 : i32 to vector<8x128xi32>
    %13 = arith.xori %8, %12 : vector<8x128xi32>
    %c16_i32 = arith.constant 16 : i32
    %14 = vector.broadcast %c16_i32 : i32 to vector<8x128xi32>
    %15 = arith.shrui %13, %14 : vector<8x128xi32>
    %16 = arith.xori %13, %15 : vector<8x128xi32>
    %c2146121005_i32 = arith.constant 2146121005 : i32
    %17 = vector.broadcast %c2146121005_i32 : i32 to vector<8x128xi32>
    %18 = arith.muli %16, %17 : vector<8x128xi32>
    %c15_i32 = arith.constant 15 : i32
    %19 = vector.broadcast %c15_i32 : i32 to vector<8x128xi32>
    %20 = arith.shrui %18, %19 : vector<8x128xi32>
    %21 = arith.xori %18, %20 : vector<8x128xi32>
    %c-2073254261_i32 = arith.constant -2073254261 : i32
    %22 = vector.broadcast %c-2073254261_i32 : i32 to vector<8x128xi32>
    %23 = arith.muli %21, %22 : vector<8x128xi32>
    %c16_i32_2 = arith.constant 16 : i32
    %24 = vector.broadcast %c16_i32_2 : i32 to vector<8x128xi32>
    %25 = arith.shrui %23, %24 : vector<8x128xi32>
    %26 = arith.xori %23, %25 : vector<8x128xi32>
    %c1_i32 = arith.constant 1 : i32
    %27 = vector.broadcast %c1_i32 : i32 to vector<8x128xi32>
    %28 = arith.shrui %26, %27 : vector<8x128xi32>
    %c536870912_i32 = arith.constant 536870912 : i32
    %29 = vector.broadcast %c536870912_i32 : i32 to vector<8x128xi32>
    %30 = arith.cmpi slt, %28, %29 : vector<8x128xi32>
    %c-1_i32 = arith.constant -1 : i32
    %31 = vector.broadcast %c-1_i32 : i32 to vector<8x128xi32>
    %32 = arith.select %30, %31, %0 : vector<8x128xi1>, vector<8x128xi32>
    %c0_3 = arith.constant 0 : index
    %c0_4 = arith.constant 0 : index
    %33 = vector.load %arg3[%c0_3, %c0_4] : memref<8x128xi32, #tpu.memory_space<vmem>>, vector<8x128xi32>
    tpu.vector_store %arg3[%c0_3, %c0_4], %32 {strides = array<i32>} : memref<8x128xi32, #tpu.memory_space<vmem>>, vector<8x128xi32>,
    return
  }
  func.func @transform_0(%arg0: i32, %arg1: memref<1xi32, #tpu.memory_space<smem>>) -> (i32, i32) {
    %c0_i32 = arith.constant 0 : i32
    %c0_i32_0 = arith.constant 0 : i32
    return %arg0, %c0_i32 : i32, i32
  }
  func.func @transform_1(%arg0: i32, %arg1: memref<1xi32, #tpu.memory_space<smem>>) -> (i32, i32) {
    %c0_i32 = arith.constant 0 : i32
    %c0_i32_0 = arith.constant 0 : i32
    return %arg0, %c0_i32 : i32, i32
  }
}

</mosaic_0001>

<llo_original>
// kernel: tpu_custom_call.1
$region0: #{tpu_custom_call.1}
  #allocation0 [shape = 'u32[]', space=smem, size = 0x4, offset = 0x4, fixed_abs, tag = 'smem constant byte address 0x4 - core index']
  #allocation1 [shape = 'u32[144,128]{1,0:T(1,128)}', space=vmem, size = 0x12000, scoped, tag = 'internal scratch']
  #allocation2 [shape = 's32[1]{0}', space=sflag, size = 0x4, scoped, tag = 'scoped memory for tpu_custom_call.1']
  #allocation3 [shape = 's32[1]{0:T(128)S(6)}', space=smem, size = 0x200, scoped, tag = 'prefetched SMEM operand 0']
  %s0 = inlined_call_operand.<no memory space> [shape: s32[1], index: 0, kind: input, shape index: {}]
  %s1 = inlined_call_operand.hbm [shape: s32[8,128], index: 1, kind: input, shape index: {}]
  %s2 = inlined_call_operand.hbm [shape: s32[8,128], index: 2, kind: output, shape index: {}]
  %s3 = sld [smem:[#allocation0]]
  $region18: #{tpu_custom_call.1} parent=0
    _
  %s5 = ssub.s32 1, %s3
  %s6 = scalar_select 0, %s5, %s3
  %7 = sst [smem:[#allocation3]] %s0
  $region1: #{tpu_custom_call.1} parent=0
    #allocation4 [shape = 'u8[4096]{0}', space=vmem, size = 0x1000, scoped, tag = 'input window, operand 1, single buffered']
    #allocation5 [shape = 's32[1]{0}', space=sflag, size = 0x4, scoped, tag = 'scoped memory for tpu_custom_call.1']
    #allocation6 [shape = 's32[1]{0}', space=sflag, size = 0x4, scoped, tag = 'scoped memory for tpu_custom_call.1']
    #allocation7 [shape = 'u8[4096]{0}', space=vmem, size = 0x1000, scoped, tag = 'output window, operand 0, single buffered']
    %8 = vsyncpa [#allocation5], 0
    %9 = vsyncpa [#allocation6], 0
    // Predicated region
    $region2: #{tpu_custom_call.1} parent=1 // pred_check
      _
    $region3: #{tpu_custom_call.1} parent=1 // pred_check_branch
      %11 = sbr.rel (0) target = $region5
    $region4: #{tpu_custom_call.1} parent=1 // pred_region
      %s13 = ssub.s32 128, 128
      %14 = vsyncadd [#allocation5], %s13
      %s16 = sshll.u32 [#allocation4], 4
      %s17 = int_to_ptr.vmem [resolvable:$true] %s16
      %19 = dma.hbm_to_vmem [thread:$0]  %s1, 128, %s17, [#allocation5]
    $region5: #{tpu_custom_call.1} parent=1 // pred_fallthru
      _
    // Predicated region
    $region6: #{tpu_custom_call.1} parent=1 // pred_check
      _
    $region7: #{tpu_custom_call.1} parent=1 // pred_check_branch
      %21 = sbr.rel (0) target = $region9
    $region8: #{tpu_custom_call.1} parent=1 // pred_region
      %22 = dma.done [#allocation5], 128
    $region9: #{tpu_custom_call.1} parent=1 // pred_fallthru
      _
    %v23 = vld [vmem:[#allocation4] sm:$0xff]
    %v24 = vlaneseq
    %v25 = vshrl.u32 %v24, 7
    %s26 = smul.u32 0, 8
    %v27 = vstv %s26
    %v28 = vadd.s32 %v25, %v27
    %v29 = vlaneseq
    %v30 = vand.u32 %v29, 127
    %v31 = vmul.u32 %v28, 128
    %v32 = vadd.s32 %v31, %v30
    %s33 = sld [smem:[#allocation3]]
    %s34 = sxor.u32 %s33, 2654435769
    %s35 = smul.u32 %s34, 2246822507
    %v36 = vstv %s35
    %v37 = vxor.u32 %v32, %v36
    %v38 = vshrl.u32 %v37, 16
    %v39 = vxor.u32 %v37, %v38
    %v40 = vmul.u32 %v39, 2146121005
    %v41 = vshrl.u32 %v40, 15
    %v42 = vxor.u32 %v40, %v41
    %v43 = vmul.u32 %v42, 2221713035
    %v44 = vshrl.u32 %v43, 16
    %v45 = vxor.u32 %v43, %v44
    %v46 = vshrl.u32 %v45, 1
    %vm47 = vcmp.lt.s32.totalorder %v46, 536870912
    %v48 = vsel %vm47, 4294967295, %v23
    %49 = vst [vmem:[#allocation7] sm:$0xff] %v48
    // Predicated region
    $region10: #{tpu_custom_call.1} parent=1 // pred_check
      _
    $region11: #{tpu_custom_call.1} parent=1 // pred_check_branch
      %51 = sbr.rel (0) target = $region13
    $region12: #{tpu_custom_call.1} parent=1 // pred_region
      %s53 = ssub.s32 128, 128
      %54 = vsyncadd [#allocation6], %s53
      %s56 = sshll.u32 [#allocation7], 4
      %s57 = int_to_ptr.vmem [resolvable:$true] %s56
      %59 = dma.vmem_to_hbm [thread:$0]  %s57, 128, %s2, [#allocation6]
    $region13: #{tpu_custom_call.1} parent=1 // pred_fallthru
      _
    // Predicated region
    $region14: #{tpu_custom_call.1} parent=1 // pred_check
      _
    $region15: #{tpu_custom_call.1} parent=1 // pred_check_branch
      %61 = sbr.rel (0) target = $region17
    $region16: #{tpu_custom_call.1} parent=1 // pred_region
      %62 = dma.done [#allocation6], 128
    $region17: #{tpu_custom_call.1} parent=1 // pred_fallthru
      _
    %63 = vsyncpa [#allocation5], 1
    %64 = vsyncpa [#allocation6], 1

</llo_original>
